<compile_context>
chip_gen: v6e
topology: v6e:2x2x1
jax: 0.10.0
libtpu: 0.0.40
codegen_flags: <defaults>
</compile_context>

<pallas_src>
import math

import jax
import jax.numpy as jnp
from jax.experimental import pallas as pl
from jax.experimental.pallas import tpu as pltpu


def _round_up(n, m):
    return ((n + m - 1) // m) * m


def _vmem_budget_bytes():
    """Generation-aware VMEM sizing: (tile-sizing budget, Mosaic scoped-vmem limit)."""
    try:
        cap = int(pltpu.get_tpu_info().vmem_capacity_bytes)  # 128 MiB v5e/v6e, 64 MiB v7x
    except Exception:
        cap = 64 * 1024 * 1024                               # conservative fallback (v7x)
    return cap // 2, (cap * 3) // 4


def _single_buffer_kw():
    """pipeline_mode=pl.Buffered(1) for constant-index (resident) blocks, if supported."""
    if not hasattr(pl, "Buffered"):
        return {}
    try:
        pl.BlockSpec((8, 128), lambda i: (0, 0), pipeline_mode=pl.Buffered(1))
    except Exception:
        return {}
    return {"pipeline_mode": pl.Buffered(1)}


def _choose_tiles(B, D, C, *, in_bytes, out_bytes, budget_bytes):
    """Pick (tile_b, tile_c, tile_k) and padded array sizes for the 3-D grid."""
    LANE = 128       # vreg lane width -> class tiles are lane-dense
    B_MIN = 16       # bf16 sublane packing: never go below 16 rows
    B_ALIGN = 256    # full 256x256 MXU pass (v6e/v7x); 2x 128x128 passes on v5e
    B_MAX = 2048
    K_CAP = 2048     # max feature chunk per grid step (multiple of 128)
    C_CAP = 2048     # max class chunk per grid step (multiple of 128)

    # ---- class (output lane) axis ----
    c128 = _round_up(C, LANE)
    tile_c = c128 if c128 <= C_CAP else C_CAP
    C_pad = _round_up(C, tile_c)

    # ---- feature (reduction) axis: keep whole when modest, else K-tile ----
    if D <= K_CAP:
        tile_k, D_pad = D, D
    else:
        tile_k = K_CAP
        D_pad = _round_up(D, tile_k)

    # ---- batch axis: spend the remaining VMEM budget on the largest tile ----
    fixed = 2 * tile_k * tile_c * in_bytes + 2 * tile_c * 4                 # weight + bias
    per_row = 2 * tile_k * in_bytes + 2 * tile_c * out_bytes + tile_c * 4   # x + out + f32 acc
    b_budget = max(B_MIN, (budget_bytes - fixed) // per_row)

    b_full = _round_up(B, B_MIN)
    if b_full <= min(b_budget, B_MAX):
        tile_b = b_full                                    # whole batch in one tile
    else:
        tile_b = min(b_budget, B_MAX)
        tile_b = max(B_ALIGN, (tile_b // B_ALIGN) * B_ALIGN)

    # v7x: make sure there are >=2 batch tiles for the 2 TensorCores to split.
    # (Neutral on single-core v5e/v6e - one extra ~0.35us grid step.)
    if _round_up(B, tile_b) // tile_b < 2 and tile_b >= 2 * B_ALIGN:
        tile_b = _round_up(pl.cdiv(B, 2), B_ALIGN)

    B_pad = _round_up(B, tile_b)
    return tile_b, tile_c, tile_k, B_pad, C_pad, D_pad


def _linear_probe_kernel(x_ref, w_ref, b_ref, o_ref, acc_ref):
    # x_ref: (tile_b, tile_k)   w_ref: (tile_k, tile_c)   b_ref: (1, tile_c) f32
    # o_ref: (tile_b, tile_c)   acc_ref: (tile_b, tile_c) f32 scratch
    k = pl.program_id(2)

    @pl.when(k == 0)
    def _():
        acc_ref[...] = jnp.zeros_like(acc_ref)

    acc_ref[...] += jnp.dot(x_ref[...], w_ref[...],
                            preferred_element_type=jnp.float32)

    @pl.when(k == pl.num_programs(2) - 1)
    def _():
        o_ref[...] = (acc_ref[...] + b_ref[...]).astype(o_ref.dtype)


def linear_probe(x, weight, bias, *, compute_dtype=jnp.bfloat16,
                 out_dtype=jnp.float32):
    """Forward pass of LinearProbe (torch nn.Linear): x @ weight.T + bias.

    Args:
      x:      (B, D) float32 input features.
      weight: (C, D) float32 - PyTorch nn.Linear layout (out_features, in_features).
      bias:   (C,)   float32.
      compute_dtype: matmul input dtype (bf16 default, f32 for closer parity).
      out_dtype:     logits dtype (f32 default; bf16 halves output HBM traffic).

    Returns:
      (B, C) out_dtype logits, matching torch's `x @ weight.T + bias`.
    """
    B, D = x.shape
    C, D2 = weight.shape
    assert D == D2, "input_dim mismatch"

    in_bytes = jnp.dtype(compute_dtype).itemsize
    out_bytes = jnp.dtype(out_dtype).itemsize

    budget, vmem_limit = _vmem_budget_bytes()
    tile_b, tile_c, tile_k, B_pad, C_pad, D_pad = _choose_tiles(
        B, D, C, in_bytes=in_bytes, out_bytes=out_bytes, budget_bytes=budget)
    n_b, n_c, n_k = B_pad // tile_b, C_pad // tile_c, D_pad // tile_k

    # ---- wrapper-side prep (cast / transpose / zero-pad); hoist in eval sweeps ----
    x_p = x.astype(compute_dtype)
    if (B_pad, D_pad) != (B, D):
        x_p = jnp.pad(x_p, ((0, B_pad - B), (0, D_pad - D)))
    # One-time transpose: stationary operand becomes lane-dense in C_pad.
    w_p = weight.T.astype(compute_dtype)
    if (D_pad, C_pad) != (D, C):
        w_p = jnp.pad(w_p, ((0, D_pad - D), (0, C_pad - C)))
    b_p = bias.astype(jnp.float32).reshape(1, C)
    if C_pad != C:
        b_p = jnp.pad(b_p, ((0, 0), (0, C_pad - C)))

    # Constant-index (resident) blocks don't need a second revolving buffer.
    single_buf = _single_buffer_kw()
    w_kw = single_buf if (n_c == 1 and n_k == 1) else {}
    b_kw = single_buf if n_c == 1 else {}

    cost = pl.CostEstimate(
        flops=2 * B_pad * D_pad * C_pad,
        transcendentals=0,
        bytes_accessed=(n_c * B_pad * D_pad * in_bytes     # x (re-read per class tile)
                        + n_b * D_pad * C_pad * in_bytes   # weight (re-read per batch tile)
                        + C_pad * 4                        # bias
                        + B_pad * C_pad * out_bytes),      # logits
    )

    out = pl.pallas_call(
        _linear_probe_kernel,
        out_shape=jax.ShapeDtypeStruct((B_pad, C_pad), out_dtype),
        grid_spec=pltpu.PrefetchScalarGridSpec(
            num_scalar_prefetch=0,
            grid=(n_b, n_c, n_k),
            in_specs=[
                pl.BlockSpec((tile_b, tile_k), lambda i, j, k: (i, k)),          # x
                pl.BlockSpec((tile_k, tile_c), lambda i, j, k: (k, j), **w_kw),  # weight^T
                pl.BlockSpec((1, tile_c), lambda i, j, k: (0, j), **b_kw),       # bias
            ],
            out_specs=pl.BlockSpec((tile_b, tile_c), lambda i, j, k: (i, j)),
            scratch_shapes=[pltpu.VMEM((tile_b, tile_c), jnp.float32)],
        ),
        compiler_params=pltpu.CompilerParams(
            dimension_semantics=("parallel", "parallel", "arbitrary"),
            vmem_limit_bytes=int(vmem_limit),
        ),
        cost_estimate=cost,
    )(x_p, w_p, b_p)

    # Strip padding only when padding was actually added (avoids an extra HBM copy).
    if (B_pad, C_pad) == (B, C):
        return out
    return out[:B, :C]


def init_linear_probe_params(key, input_dim, num_classes):
    """Deterministic init mirroring nn.Linear default (uniform +/- 1/sqrt(in))."""
    k_w, k_b = jax.random.split(key)
    bound = 1.0 / math.sqrt(input_dim)
    weight = jax.random.uniform(
        k_w, (num_classes, input_dim), jnp.float32, -bound, bound
    )
    bias = jax.random.uniform(k_b, (num_classes,), jnp.float32, -bound, bound)
    return weight, bias


if __name__ == "__main__":
    # Small shapes consistent with the module: batch=8, input_dim=32, classes=10
    B, D, C = 8, 32, 10

    key = jax.random.PRNGKey(0)
    k_x, k_p = jax.random.split(key)

    x = jax.random.normal(k_x, (B, D), dtype=jnp.float32)
    weight, bias = init_linear_probe_params(k_p, D, C)

    out = linear_probe(x, weight, bias)
    out = jax.block_until_ready(out)
    assert out.shape == (B, C)
    assert out.dtype == jnp.float32

    # Reference with the same bf16 input rounding (f32 accumulation) -> tight match.
    xb = x.astype(jnp.bfloat16).astype(jnp.float32)
    wb = weight.astype(jnp.bfloat16).astype(jnp.float32)
    ref_bf16 = xb @ wb.T + bias
    assert jnp.allclose(out, ref_bf16, atol=1e-3, rtol=1e-3)

    # Loose sanity check against the full-precision nn.Linear math.
    ref_f32 = x @ weight.T + bias
    assert jnp.allclose(out, ref_f32, atol=3e-2, rtol=3e-2)

    # f32 compute path (closer parity with torch's f32 nn.Linear).
    out32 = jax.block_until_ready(
        linear_probe(x, weight, bias, compute_dtype=jnp.float32)
    )
    assert out32.shape == (B, C)
    assert jnp.allclose(out32, ref_f32, atol=1e-2, rtol=1e-2)

    print("KERNEL_OK")
</pallas_src>

<mosaic_0001>
module attributes {stable_mosaic.version = 11 : i64} {
  func.func @_linear_probe_kernel(%arg0: i32, %arg1: i32, %arg2: i32, %arg3: memref<16x32xbf16, #tpu.memory_space<vmem>>, %arg4: memref<32x128xbf16, #tpu.memory_space<vmem>>, %arg5: memref<1x128xf32, #tpu.memory_space<vmem>>, %arg6: memref<16x128xf32, #tpu.memory_space<vmem>>, %arg7: memref<16x128xf32, #tpu.memory_space<vmem>>) attributes {dimension_semantics = [#tpu.dimension_semantics<parallel>, #tpu.dimension_semantics<parallel>, #tpu.dimension_semantics<arbitrary>], iteration_bounds = array<i64: 1, 1, 1>, scalar_prefetch = 0 : i64, scratch_operands = 1 : i64, tpu.core_type = #tpu.core_type<tc>, window_params = [{transform_indices = @transform_0, window_bounds = array<i64: 16, 32>}, {pipeline_mode = #tpu.pipeline_mode<synchronous>, transform_indices = @transform_1, window_bounds = array<i64: 32, 128>}, {pipeline_mode = #tpu.pipeline_mode<synchronous>, transform_indices = @transform_2, window_bounds = array<i64: 1, 128>}, {transform_indices = @transform_3, window_bounds = array<i64: 16, 128>}]} {
    %c0_i32 = arith.constant 0 : i32
    %0 = arith.cmpi eq, %arg2, %c0_i32 : i32
    %1 = arith.extui %0 : i1 to i32
    %c0_i32_0 = arith.constant 0 : i32
    %2 = arith.cmpi ne, %1, %c0_i32_0 : i32
    scf.if %2 {
      %cst_10 = arith.constant 0.000000e+00 : f32
      %12 = vector.broadcast %cst_10 : f32 to vector<16x128xf32>
      %c0_11 = arith.constant 0 : index
      %c0_12 = arith.constant 0 : index
      %13 = vector.load %arg7[%c0_11, %c0_12] : memref<16x128xf32, #tpu.memory_space<vmem>>, vector<16x128xf32>
      tpu.vector_store %arg7[%c0_11, %c0_12], %12 {strides = array<i32>} : memref<16x128xf32, #tpu.memory_space<vmem>>, vector<16x128xf32>,
    } else {
    }
    %c0 = arith.constant 0 : index
    %c0_1 = arith.constant 0 : index
    %3 = vector.load %arg7[%c0, %c0_1] : memref<16x128xf32, #tpu.memory_space<vmem>>, vector<16x128xf32>
    %c0_2 = arith.constant 0 : index
    %c0_3 = arith.constant 0 : index
    %4 = vector.load %arg3[%c0_2, %c0_3] : memref<16x32xbf16, #tpu.memory_space<vmem>>, vector<16x32xbf16>
    %c0_4 = arith.constant 0 : index
    %c0_5 = arith.constant 0 : index
    %5 = vector.load %arg4[%c0_4, %c0_5] : memref<32x128xbf16, #tpu.memory_space<vmem>>, vector<32x128xbf16>
    %cst = arith.constant dense<0.000000e+00> : vector<16x128xf32>
    %6 = tpu.matmul %4, %5, %cst {dimension_numbers = #tpu.dot_dimension_numbers<[1], [0], [0], [1], [0, 0, 1, 1], [], []>} : vector<16x32xbf16>, vector<32x128xbf16>, vector<16x128xf32> -> vector<16x128xf32>
    %7 = arith.addf %3, %6 : vector<16x128xf32>
    %c0_6 = arith.constant 0 : index
    %c0_7 = arith.constant 0 : index
    %8 = vector.load %arg7[%c0_6, %c0_7] : memref<16x128xf32, #tpu.memory_space<vmem>>, vector<16x128xf32>
    tpu.vector_store %arg7[%c0_6, %c0_7], %7 {strides = array<i32>} : memref<16x128xf32, #tpu.memory_space<vmem>>, vector<16x128xf32>,
    %c0_i32_8 = arith.constant 0 : i32
    %9 = arith.cmpi eq, %arg2, %c0_i32_8 : i32
    %10 = arith.extui %9 : i1 to i32
    %c0_i32_9 = arith.constant 0 : i32
    %11 = arith.cmpi ne, %10, %c0_i32_9 : i32
    scf.if %11 {
      %c0_10 = arith.constant 0 : index
      %c0_11 = arith.constant 0 : index
      %12 = vector.load %arg7[%c0_10, %c0_11] : memref<16x128xf32, #tpu.memory_space<vmem>>, vector<16x128xf32>
      %c0_12 = arith.constant 0 : index
      %c0_13 = arith.constant 0 : index
      %13 = vector.load %arg5[%c0_12, %c0_13] : memref<1x128xf32, #tpu.memory_space<vmem>>, vector<1x128xf32>
      %14 = vector.broadcast %13 : vector<1x128xf32> to vector<16x128xf32>
      %15 = arith.addf %12, %14 : vector<16x128xf32>
      %c0_14 = arith.constant 0 : index
      %c0_15 = arith.constant 0 : index
      %16 = vector.load %arg6[%c0_14, %c0_15] : memref<16x128xf32, #tpu.memory_space<vmem>>, vector<16x128xf32>
      tpu.vector_store %arg6[%c0_14, %c0_15], %15 {strides = array<i32>} : memref<16x128xf32, #tpu.memory_space<vmem>>, vector<16x128xf32>,
    } else {
    }
    return
  }
  func.func @transform_0(%arg0: i32, %arg1: i32, %arg2: i32) -> (i32, i32) {
    %c0_i32 = arith.constant 0 : i32
    return %arg0, %arg2 : i32, i32
  }
  func.func @transform_1(%arg0: i32, %arg1: i32, %arg2: i32) -> (i32, i32) {
    %c0_i32 = arith.constant 0 : i32
    return %arg2, %arg1 : i32, i32
  }
  func.func @transform_2(%arg0: i32, %arg1: i32, %arg2: i32) -> (i32, i32) {
    %c0_i32 = arith.constant 0 : i32
    %c0_i32_0 = arith.constant 0 : i32
    return %c0_i32, %arg1 : i32, i32
  }
  func.func @transform_3(%arg0: i32, %arg1: i32, %arg2: i32) -> (i32, i32) {
    %c0_i32 = arith.constant 0 : i32
    return %arg0, %arg1 : i32, i32
  }
}

</mosaic_0001>

<llo_original>
// kernel: tpu_custom_call.1
$region0: #{tpu_custom_call.1}
  #allocation0 [shape = 'u32[]', space=smem, size = 0x4, offset = 0x4, fixed_abs, tag = 'smem constant byte address 0x4 - core index']
  #allocation1 [shape = 'u32[144,128]{1,0:T(1,128)}', space=vmem, size = 0x12000, scoped, tag = 'internal scratch']
  #allocation2 [shape = 'f32[16,128]{1,0:T(8,128)}', space=vmem, size = 0x2000, scoped, tag = 'scratch operand']
  %s0 = inlined_call_operand.hbm [shape: bf16[16,32], index: 0, kind: input, shape index: {}]
  %s1 = inlined_call_operand.hbm [shape: bf16[32,128], index: 1, kind: input, shape index: {}]
  %s2 = inlined_call_operand.vmem [shape: f32[1,128], index: 2, kind: input, shape index: {}]
  %s3 = inlined_call_operand.hbm [shape: f32[16,128], index: 3, kind: output, shape index: {}]
  %s4 = sld [smem:[#allocation0]]
  $region38: #{tpu_custom_call.1} parent=0
    _
  %s6 = ssub.s32 1, %s4
  %s7 = scalar_select 0, %s6, %s4
  $region1: #{tpu_custom_call.1} parent=0
    #allocation3 [shape = 'u8[4096]{0}', space=vmem, size = 0x1000, scoped, tag = 'input window, operand 0, single buffered']
    #allocation4 [shape = 's32[1]{0}', space=sflag, size = 0x4, scoped, tag = 'scoped memory for tpu_custom_call.1']
    #allocation5 [shape = 's32[1]{0}', space=sflag, size = 0x4, scoped, tag = 'scoped memory for tpu_custom_call.1']
    #allocation6 [shape = 'u8[8192]{0}', space=vmem, size = 0x2000, scoped, tag = 'input window, operand 1, single buffered']
    #allocation7 [shape = 's32[1]{0}', space=sflag, size = 0x4, scoped, tag = 'scoped memory for tpu_custom_call.1']
    #allocation8 [shape = 'u8[8192]{0}', space=vmem, size = 0x2000, scoped, tag = 'output window, operand 0, single buffered']
    %8 = vsyncpa [#allocation4], 0
    %9 = vsyncpa [#allocation7], 0
    %10 = vsyncpa [#allocation5], 0
    // Predicated region
    $region2: #{tpu_custom_call.1} parent=1 // pred_check
      _
    $region3: #{tpu_custom_call.1} parent=1 // pred_check_branch
      %12 = sbr.rel (0) target = $region5
    $region4: #{tpu_custom_call.1} parent=1 // pred_region
      %s14 = ssub.s32 128, 128
      %15 = vsyncadd [#allocation4], %s14
      %s16 = sshll.u32 [#allocation3], 4
      %s17 = int_to_ptr.vmem [resolvable:$true] %s16
      %22 = dma.hbm_to_vmem [thread:$0]  %s0, 128, %s17, [#allocation4], 64, 64, 4
    $region5: #{tpu_custom_call.1} parent=1 // pred_fallthru
      _
    // Predicated region
    $region6: #{tpu_custom_call.1} parent=1 // pred_check
      _
    $region7: #{tpu_custom_call.1} parent=1 // pred_check_branch
      %24 = sbr.rel (0) target = $region9
    $region8: #{tpu_custom_call.1} parent=1 // pred_region
      %s26 = ssub.s32 256, 256
      %27 = vsyncadd [#allocation7], %s26
      %s28 = sshll.u32 [#allocation6], 4
      %s29 = int_to_ptr.vmem [resolvable:$true] %s28
      %34 = dma.hbm_to_vmem [thread:$0]  %s1, 256, %s29, [#allocation7], 64, 64, 4
    $region9: #{tpu_custom_call.1} parent=1 // pred_fallthru
      _
    // Predicated region
    $region10: #{tpu_custom_call.1} parent=1 // pred_check
      _
    $region11: #{tpu_custom_call.1} parent=1 // pred_check_branch
      %36 = sbr.rel (0) target = $region13
    $region12: #{tpu_custom_call.1} parent=1 // pred_region
      _
    $region13: #{tpu_custom_call.1} parent=1 // pred_fallthru
      _
    // Predicated region
    $region14: #{tpu_custom_call.1} parent=1 // pred_check
      _
    $region15: #{tpu_custom_call.1} parent=1 // pred_check_branch
      %38 = sbr.rel (0) target = $region17
    $region16: #{tpu_custom_call.1} parent=1 // pred_region
      %39 = dma.done [#allocation4], 128
    $region17: #{tpu_custom_call.1} parent=1 // pred_fallthru
      _
    // Predicated region
    $region18: #{tpu_custom_call.1} parent=1 // pred_check
      _
    $region19: #{tpu_custom_call.1} parent=1 // pred_check_branch
      %41 = sbr.rel (0) target = $region21
    $region20: #{tpu_custom_call.1} parent=1 // pred_region
      %42 = dma.done [#allocation7], 256
    $region21: #{tpu_custom_call.1} parent=1 // pred_fallthru
      _
    %p44 = scmp.eq.s32.totalorder 0, 0
    // Predicated region
    $region22: #{tpu_custom_call.1} parent=1 // pred_check
      %p45 = pneg %p44
    $region23: #{tpu_custom_call.1} parent=1 // pred_check_branch
      %47 = sbr.rel (%p45) target = $region25
    $region24: #{tpu_custom_call.1} parent=1 // pred_region
      %48 = vst [vmem:[#allocation2] sm:$0xff] 0.0
      %49 = vst [vmem:[#allocation2 + $0x8] sm:$0xff] 0.0
    $region25: #{tpu_custom_call.1} parent=1 // pred_fallthru
      _
    %v50 = vld [vmem:[#allocation2] sm:$0xff]
    %v51 = vld [vmem:[#allocation2 + $0x8] sm:$0xff]
    %v52 = vld [vmem:[#allocation3] sm:$0xf]
    %v53 = vld [vmem:[#allocation3 + $0x4] sm:$0xf]
    %v54 = vld [vmem:[#allocation6] sm:$0xf]
    %v55 = vld [vmem:[#allocation6 + $0x4] sm:$0xf]
    %v56 = vld [vmem:[#allocation6 + $0x8] sm:$0xf]
    %v57 = vld [vmem:[#allocation6 + $0xc] sm:$0xf]
    %v60 = vunpack.c.l.b16 %v52
    %v61 = vunpack.c.l.b16 %v53
    %v62 = vpack.c.b16 %v61, %v60
    %v67 = vunpack.c.l.b16 %v54
    %v68 = vunpack.c.l.b16 %v55
    %v69 = vunpack.c.l.b16 %v56
    %v70 = vunpack.c.l.b16 %v57
    %v71 = vpack.c.b16 %v68, %v67
    %v72 = vpack.c.b16 %v70, %v69
    %vm75 = vcmask 261120
    %v77 = vsel %vm75, %v62, 0
    %79 = vmatprep.subr.bf16.mxu0 0
    %80 = vmatpush1.bf16.msra.mxu0 0
    %81 = vmatprep.subr.bf16.mxu0 0
    %82 = vmatpush1.bf16.msra.mxu0 0
    %83 = vmatprep.subr.bf16.mxu0 0
    %84 = vmatpush1.bf16.msra.mxu0 0
    %85 = vmatprep.subr.bf16.mxu0 0
    %86 = vmatpush1.bf16.msra.mxu0 0
    %87 = vmatprep.subr.bf16.mxu0 0
    %88 = vmatpush1.bf16.msra.mxu0 0
    %89 = vmatprep.subr.bf16.mxu0 0
    %90 = vmatpush1.bf16.msra.mxu0 0
    %91 = vmatprep.subr.bf16.mxu0 0
    %92 = vmatpush1.bf16.msra.mxu0 %v72
    %93 = vmatprep.subr.bf16.mxu0 0
    %94 = vmatpush1.bf16.msra.mxu0 %v71
    %95 = vmatprep.subr.bf16.mxu0 0
    %96 = vmatpush2.bf16.msra.mxu0 0
    %97 = vmatprep.subr.bf16.mxu0 0
    %98 = vmatpush2.bf16.msra.mxu0 0
    %99 = vmatprep.subr.bf16.mxu0 0
    %100 = vmatpush2.bf16.msra.mxu0 0
    %101 = vmatprep.subr.bf16.mxu0 0
    %102 = vmatpush2.bf16.msra.mxu0 0
    %103 = vmatprep.subr.bf16.mxu0 0
    %104 = vmatpush2.bf16.msra.mxu0 0
    %105 = vmatprep.subr.bf16.mxu0 0
    %106 = vmatpush2.bf16.msra.mxu0 0
    %107 = vmatprep.subr.bf16.mxu0 0
    %108 = vmatpush2.bf16.msra.mxu0 0
    %109 = vmatprep.subr.bf16.mxu0 0
    %110 = vmatpush2.bf16.msra.mxu0 0
    %111 = vmatprep.mubr.bf16.mxu0 0
    %112 = vmatmul.mubr.bf16.gmra.mxu0 %v77
    %v113 = vpop.f32.mrf.mxu0
    %v114 = vadd.f32 0.0, %v113
    %v115 = vpop.f32.mrf.mxu0
    %v116 = vpop.f32.mrf.mxu0
    %v117 = vadd.f32 0.0, %v116
    %v118 = vpop.f32.mrf.mxu0
    %119 = vdwg.mxu0
    %v120 = vadd.f32 %v50, %v114
    %v121 = vadd.f32 %v51, %v117
    %122 = vst [vmem:[#allocation2] sm:$0xff] %v120
    %123 = vst [vmem:[#allocation2 + $0x8] sm:$0xff] %v121
    // Predicated region
    $region26: #{tpu_custom_call.1} parent=1 // pred_check
      %p124 = pneg %p44
    $region27: #{tpu_custom_call.1} parent=1 // pred_check_branch
      %126 = sbr.rel (%p124) target = $region29
    $region28: #{tpu_custom_call.1} parent=1 // pred_region
      %v127 = vld [vmem:[#allocation2] sm:$0xff]
      %v128 = vld [vmem:[#allocation2 + $0x8] sm:$0xff]
      %v129 = vld [vmem:[%s2] sm:$0x1]
      %v131 = vlaneseq
      %v132 = vshrl.u32 %v131, 7
      %v133 = vsub.s32 0, %v132
      %v134 = vrot.slane %v129, %v133
      %v136 = vadd.f32 %v127, %v134
      %v137 = vadd.f32 %v128, %v134
      %138 = vst [vmem:[#allocation8] sm:$0xff] %v136
      %139 = vst [vmem:[#allocation8 + $0x8] sm:$0xff] %v137
    $region29: #{tpu_custom_call.1} parent=1 // pred_fallthru
      _
    // Predicated region
    $region30: #{tpu_custom_call.1} parent=1 // pred_check
      _
    $region31: #{tpu_custom_call.1} parent=1 // pred_check_branch
      %141 = sbr.rel (0) target = $region33
    $region32: #{tpu_custom_call.1} parent=1 // pred_region
      %s143 = ssub.s32 256, 256
      %144 = vsyncadd [#allocation5], %s143
      %s145 = sshll.u32 [#allocation8], 4
      %s146 = int_to_ptr.vmem [resolvable:$true] %s145
      %151 = dma.vmem_to_hbm [thread:$0]  %s146, 256, %s3, [#allocation5], 128, 128, 8
    $region33: #{tpu_custom_call.1} parent=1 // pred_fallthru
      _
    // Predicated region
    $region34: #{tpu_custom_call.1} parent=1 // pred_check
      _
    $region35: #{tpu_custom_call.1} parent=1 // pred_check_branch
      %153 = sbr.rel (0) target = $region37
    $region36: #{tpu_custom_call.1} parent=1 // pred_region
      %154 = dma.done [#allocation5], 256
    $region37: #{tpu_custom_call.1} parent=1 // pred_fallthru
      _
    %155 = vsyncpa [#allocation4], 1
    %156 = vsyncpa [#allocation7], 1
    %157 = vsyncpa [#allocation5], 1

</llo_original>
